<compile_context>
chip_gen: v7x
topology: tpu7x:2x2x1
jax: 0.10.0
libtpu: 0.0.40
codegen_flags: <defaults>
</compile_context>

<pallas_src>
import jax
import jax.numpy as jnp
from jax.experimental import pallas as pl
from jax.experimental.pallas import tpu as pltpu


# --------------------------------------------------------------------------
# Kernel
# --------------------------------------------------------------------------
def _dice_sums_kernel(p_ref, t_ref, out_ref, acc_pt, acc_p, acc_t):
    """p_ref/t_ref: (bn, bh, W) channel-0 tiles.  out_ref: SMEM (1, 3)."""
    first = (pl.program_id(0) == 0) & (pl.program_id(1) == 0)

    @pl.when(first)
    def _init():
        acc_pt[...] = jnp.zeros_like(acc_pt)
        acc_p[...] = jnp.zeros_like(acc_p)
        acc_t[...] = jnp.zeros_like(acc_t)

    # Cast in-kernel (keep HBM traffic in the source dtype).
    p = p_ref[...].astype(jnp.float32)           # (bn, bh, W)
    t = t_ref[...].astype(jnp.float32)

    # Pure VPU accumulation: fold the batch-block axis into the resident
    # (bh, W) f32 accumulators.  No per-tile cross-lane reduction.
    acc_pt[...] += jnp.sum(p * t, axis=0)
    acc_p[...] += jnp.sum(p, axis=0)
    acc_t[...] += jnp.sum(t, axis=0)

    last = ((pl.program_id(0) == pl.num_programs(0) - 1)
            & (pl.program_id(1) == pl.num_programs(1) - 1))

    @pl.when(last)
    def _finalize():
        # Single XLU tree reduction per quantity, once for the whole grid.
        out_ref[0, 0] = jnp.sum(acc_pt[...])
        out_ref[0, 1] = jnp.sum(acc_p[...])
        out_ref[0, 2] = jnp.sum(acc_t[...])


# --------------------------------------------------------------------------
# Tile selection (trace-time, shapes only)
# --------------------------------------------------------------------------
_TILE_BUDGET_BYTES = 2 << 20   # ~2 MiB per input tile; x2 inputs x2 buffers
                               # stays well under the 16 MiB (v5e) / 32 MiB
                               # (v6e/v7x) default scoped-VMEM limits.


def _choose_tiles(n, h, w, itemsize, budget=_TILE_BUDGET_BYTES):
    """Pick (bn, bh) so bn|n, bh|h, bh%8==0 or bh==h, tile <= budget."""
    plane = h * w * itemsize
    if plane <= budget:
        bn = 1
        start = min(n, max(1, budget // plane))
        for d in range(start, 0, -1):
            if n % d == 0:
                bn = d
                break
        return bn, h
    # Whole plane does not fit: split rows with a sublane-aligned divisor.
    bh = h
    start = min(h, max(1, budget // max(1, w * itemsize)))
    for d in range(start, 0, -1):
        if h % d == 0 and d % 8 == 0:
            bh = d
            break
    return 1, bh


# --------------------------------------------------------------------------
# pallas_call wrapper
# --------------------------------------------------------------------------
def _dice_sums(y_pred, y_true):
    """Returns a (1, 3) f32 array: [intersection, sum(pred), sum(true)]."""
    n, _c, h, w = y_pred.shape
    itemsize = max(jnp.dtype(y_pred.dtype).itemsize,
                   jnp.dtype(y_true.dtype).itemsize)
    bn, bh = _choose_tiles(n, h, w, itemsize)
    grid = (n // bn, h // bh)

    # Channel dim pinned to block 0 and squeezed -> only channel 0 is DMA'd.
    in_spec = pl.BlockSpec((bn, pl.Squeezed(), bh, w),
                           lambda i, j: (i, 0, j, 0))
    out_spec = pl.BlockSpec((1, 3), lambda i, j: (0, 0),
                            memory_space=pltpu.SMEM)

    n_elem = n * h * w
    cost = pl.CostEstimate(
        flops=4 * n_elem,                     # mul + 3 accumulating adds
        transcendentals=0,
        bytes_accessed=n_elem * (jnp.dtype(y_pred.dtype).itemsize
                                 + jnp.dtype(y_true.dtype).itemsize) + 12,
    )

    # Raise the scoped-VMEM limit only if the (rare) fallback tiling needs it.
    tile_bytes = bn * bh * w * (jnp.dtype(y_pred.dtype).itemsize
                                + jnp.dtype(y_true.dtype).itemsize)
    vmem_need = 2 * tile_bytes + 3 * bh * w * 4 + (2 << 20)
    vmem_limit = int(min(vmem_need, 100 << 20)) if vmem_need > (16 << 20) else None

    # Both grid axes feed the same resident accumulators -> "arbitrary".
    # (v7x megacore split would need per-core partial outputs; not done here.)
    return pl.pallas_call(
        _dice_sums_kernel,
        out_shape=jax.ShapeDtypeStruct((1, 3), jnp.float32),
        grid_spec=pltpu.PrefetchScalarGridSpec(
            num_scalar_prefetch=0,
            grid=grid,
            in_specs=[in_spec, in_spec],
            out_specs=out_spec,
            scratch_shapes=[
                pltpu.VMEM((bh, w), jnp.float32),   # acc(p*t)
                pltpu.VMEM((bh, w), jnp.float32),   # acc(p)
                pltpu.VMEM((bh, w), jnp.float32),   # acc(t)
            ],
        ),
        compiler_params=pltpu.CompilerParams(
            dimension_semantics=("arbitrary", "arbitrary"),
            vmem_limit_bytes=vmem_limit,
        ),
        cost_estimate=cost,
    )(y_pred, y_true)


@jax.jit
def _dice_loss(y_pred, y_true, smooth):
    sums = _dice_sums(y_pred, y_true)
    inter, psum, tsum = sums[0, 0], sums[0, 1], sums[0, 2]
    dsc = (2.0 * inter + smooth) / (psum + tsum + smooth)
    return 1.0 - dsc


class DiceLoss:
    """JAX/Pallas port of the PyTorch DiceLoss module."""

    def __init__(self, num_classes=8):
        self.smooth = 1.0
        self.classes = 3          # unused in forward (kept for parity)
        self.ignore_index = None  # unused in forward
        self.eps = 1e-07          # unused in forward

    def __call__(self, y_pred, y_true):
        assert y_pred.shape == y_true.shape
        return _dice_loss(y_pred, y_true, self.smooth)


if __name__ == "__main__":
    key = jax.random.PRNGKey(0)
    k1, k2 = jax.random.split(key)
    # NCHW, small shapes consistent with the module's forward
    y_pred = jax.random.uniform(k1, (2, 4, 16, 16), dtype=jnp.float32)
    y_true = (jax.random.uniform(k2, (2, 4, 16, 16)) > 0.5).astype(jnp.float32)

    loss_fn = DiceLoss(num_classes=8)
    loss = loss_fn(y_pred, y_true)
    jax.block_until_ready(loss)

    # reference check in plain JAX
    p = y_pred[:, 0].reshape(-1)
    t = y_true[:, 0].reshape(-1)
    ref = 1.0 - (2.0 * jnp.sum(p * t) + 1.0) / (jnp.sum(p) + jnp.sum(t) + 1.0)
    assert jnp.allclose(loss, ref, rtol=1e-5, atol=1e-6), (loss, ref)

    print("KERNEL_OK")
</pallas_src>

<mosaic_0001>
module attributes {stable_mosaic.version = 11 : i64} {
  func.func @_dice_sums_kernel(%arg0: i32, %arg1: i32, %arg2: memref<2x1x16x16xf32, #tpu.memory_space<vmem>>, %arg3: memref<2x1x16x16xf32, #tpu.memory_space<vmem>>, %arg4: memref<1x3xf32, #tpu.memory_space<smem>>, %arg5: memref<16x16xf32, #tpu.memory_space<vmem>>, %arg6: memref<16x16xf32, #tpu.memory_space<vmem>>, %arg7: memref<16x16xf32, #tpu.memory_space<vmem>>) attributes {dimension_semantics = [#tpu.dimension_semantics<arbitrary>, #tpu.dimension_semantics<arbitrary>], iteration_bounds = array<i64: 1, 1>, scalar_prefetch = 0 : i64, scratch_operands = 3 : i64, tpu.core_type = #tpu.core_type<tc>, window_params = [{transform_indices = @transform_0, window_bounds = array<i64: 2, 1, 16, 16>}, {transform_indices = @transform_1, window_bounds = array<i64: 2, 1, 16, 16>}, {transform_indices = @transform_2, window_bounds = array<i64: 1, 3>}]} {
    %c0_i32 = arith.constant 0 : i32
    %0 = arith.cmpi eq, %arg0, %c0_i32 : i32
    %c0_i32_0 = arith.constant 0 : i32
    %1 = arith.cmpi eq, %arg1, %c0_i32_0 : i32
    %2 = arith.andi %0, %1 : i1
    %3 = arith.extui %2 : i1 to i32
    %c0_i32_1 = arith.constant 0 : i32
    %4 = arith.cmpi ne, %3, %c0_i32_1 : i32
    scf.if %4 {
      %cst_26 = arith.constant 0.000000e+00 : f32
      %27 = vector.broadcast %cst_26 : f32 to vector<16x16xf32>
      %c0_27 = arith.constant 0 : index
      %c0_28 = arith.constant 0 : index
      %28 = vector.load %arg5[%c0_27, %c0_28] : memref<16x16xf32, #tpu.memory_space<vmem>>, vector<16x16xf32>
      tpu.vector_store %arg5[%c0_27, %c0_28], %27 {strides = array<i32>} : memref<16x16xf32, #tpu.memory_space<vmem>>, vector<16x16xf32>,
      %cst_29 = arith.constant 0.000000e+00 : f32
      %29 = vector.broadcast %cst_29 : f32 to vector<16x16xf32>
      %c0_30 = arith.constant 0 : index
      %c0_31 = arith.constant 0 : index
      %30 = vector.load %arg6[%c0_30, %c0_31] : memref<16x16xf32, #tpu.memory_space<vmem>>, vector<16x16xf32>
      tpu.vector_store %arg6[%c0_30, %c0_31], %29 {strides = array<i32>} : memref<16x16xf32, #tpu.memory_space<vmem>>, vector<16x16xf32>,
      %cst_32 = arith.constant 0.000000e+00 : f32
      %31 = vector.broadcast %cst_32 : f32 to vector<16x16xf32>
      %c0_33 = arith.constant 0 : index
      %c0_34 = arith.constant 0 : index
      %32 = vector.load %arg7[%c0_33, %c0_34] : memref<16x16xf32, #tpu.memory_space<vmem>>, vector<16x16xf32>
      tpu.vector_store %arg7[%c0_33, %c0_34], %31 {strides = array<i32>} : memref<16x16xf32, #tpu.memory_space<vmem>>, vector<16x16xf32>,
    } else {
    }
    %c0 = arith.constant 0 : index
    %c0_2 = arith.constant 0 : index
    %c0_3 = arith.constant 0 : index
    %c0_4 = arith.constant 0 : index
    %5 = vector.load %arg2[%c0, %c0_2, %c0_3, %c0_4] : memref<2x1x16x16xf32, #tpu.memory_space<vmem>>, vector<2x1x16x16xf32>
    %6 = vector.shape_cast %5 : vector<2x1x16x16xf32> to vector<2x16x16xf32>
    %c0_5 = arith.constant 0 : index
    %c0_6 = arith.constant 0 : index
    %c0_7 = arith.constant 0 : index
    %c0_8 = arith.constant 0 : index
    %7 = vector.load %arg3[%c0_5, %c0_6, %c0_7, %c0_8] : memref<2x1x16x16xf32, #tpu.memory_space<vmem>>, vector<2x1x16x16xf32>
    %8 = vector.shape_cast %7 : vector<2x1x16x16xf32> to vector<2x16x16xf32>
    %c0_9 = arith.constant 0 : index
    %c0_10 = arith.constant 0 : index
    %9 = vector.load %arg5[%c0_9, %c0_10] : memref<16x16xf32, #tpu.memory_space<vmem>>, vector<16x16xf32>
    %10 = arith.mulf %6, %8 : vector<2x16x16xf32>
    %cst = arith.constant dense<0.000000e+00> : vector<16x16xf32>
    %11 = vector.multi_reduction <add>, %10, %cst [0] : vector<2x16x16xf32> to vector<16x16xf32>
    %12 = arith.addf %9, %11 : vector<16x16xf32>
    %c0_11 = arith.constant 0 : index
    %c0_12 = arith.constant 0 : index
    %13 = vector.load %arg5[%c0_11, %c0_12] : memref<16x16xf32, #tpu.memory_space<vmem>>, vector<16x16xf32>
    tpu.vector_store %arg5[%c0_11, %c0_12], %12 {strides = array<i32>} : memref<16x16xf32, #tpu.memory_space<vmem>>, vector<16x16xf32>,
    %c0_13 = arith.constant 0 : index
    %c0_14 = arith.constant 0 : index
    %14 = vector.load %arg6[%c0_13, %c0_14] : memref<16x16xf32, #tpu.memory_space<vmem>>, vector<16x16xf32>
    %cst_15 = arith.constant dense<0.000000e+00> : vector<16x16xf32>
    %15 = vector.multi_reduction <add>, %6, %cst_15 [0] : vector<2x16x16xf32> to vector<16x16xf32>
    %16 = arith.addf %14, %15 : vector<16x16xf32>
    %c0_16 = arith.constant 0 : index
    %c0_17 = arith.constant 0 : index
    %17 = vector.load %arg6[%c0_16, %c0_17] : memref<16x16xf32, #tpu.memory_space<vmem>>, vector<16x16xf32>
    tpu.vector_store %arg6[%c0_16, %c0_17], %16 {strides = array<i32>} : memref<16x16xf32, #tpu.memory_space<vmem>>, vector<16x16xf32>,
    %c0_18 = arith.constant 0 : index
    %c0_19 = arith.constant 0 : index
    %18 = vector.load %arg7[%c0_18, %c0_19] : memref<16x16xf32, #tpu.memory_space<vmem>>, vector<16x16xf32>
    %cst_20 = arith.constant dense<0.000000e+00> : vector<16x16xf32>
    %19 = vector.multi_reduction <add>, %8, %cst_20 [0] : vector<2x16x16xf32> to vector<16x16xf32>
    %20 = arith.addf %18, %19 : vector<16x16xf32>
    %c0_21 = arith.constant 0 : index
    %c0_22 = arith.constant 0 : index
    %21 = vector.load %arg7[%c0_21, %c0_22] : memref<16x16xf32, #tpu.memory_space<vmem>>, vector<16x16xf32>
    tpu.vector_store %arg7[%c0_21, %c0_22], %20 {strides = array<i32>} : memref<16x16xf32, #tpu.memory_space<vmem>>, vector<16x16xf32>,
    %c0_i32_23 = arith.constant 0 : i32
    %22 = arith.cmpi eq, %arg0, %c0_i32_23 : i32
    %c0_i32_24 = arith.constant 0 : i32
    %23 = arith.cmpi eq, %arg1, %c0_i32_24 : i32
    %24 = arith.andi %22, %23 : i1
    %25 = arith.extui %24 : i1 to i32
    %c0_i32_25 = arith.constant 0 : i32
    %26 = arith.cmpi ne, %25, %c0_i32_25 : i32
    scf.if %26 {
      %c0_26 = arith.constant 0 : index
      %c0_27 = arith.constant 0 : index
      %27 = vector.load %arg5[%c0_26, %c0_27] : memref<16x16xf32, #tpu.memory_space<vmem>>, vector<16x16xf32>
      %28 = vector.shape_cast %27 : vector<16x16xf32> to vector<1x16x16xf32>
      %cst_28 = arith.constant dense<0.000000e+00> : vector<1xf32>
      %29 = vector.multi_reduction <add>, %28, %cst_28 [1, 2] : vector<1x16x16xf32> to vector<1xf32>
      %30 = vector.shape_cast %29 : vector<1xf32> to vector<1x1x1xf32>
      %31 = vector.extract %30[0, 0, 0] : f32 from vector<1x1x1xf32>
      %c0_29 = arith.constant 0 : index
      %c0_30 = arith.constant 0 : index
      %32 = memref.load %arg4[%c0_29, %c0_30] : memref<1x3xf32, #tpu.memory_space<smem>>
      memref.store %31, %arg4[%c0_29, %c0_30] : memref<1x3xf32, #tpu.memory_space<smem>>
      %c0_31 = arith.constant 0 : index
      %c0_32 = arith.constant 0 : index
      %33 = vector.load %arg6[%c0_31, %c0_32] : memref<16x16xf32, #tpu.memory_space<vmem>>, vector<16x16xf32>
      %34 = vector.shape_cast %33 : vector<16x16xf32> to vector<1x16x16xf32>
      %cst_33 = arith.constant dense<0.000000e+00> : vector<1xf32>
      %35 = vector.multi_reduction <add>, %34, %cst_33 [1, 2] : vector<1x16x16xf32> to vector<1xf32>
      %36 = vector.shape_cast %35 : vector<1xf32> to vector<1x1x1xf32>
      %37 = vector.extract %36[0, 0, 0] : f32 from vector<1x1x1xf32>
      %c0_34 = arith.constant 0 : index
      %c1 = arith.constant 1 : index
      %38 = memref.load %arg4[%c0_34, %c1] : memref<1x3xf32, #tpu.memory_space<smem>>
      memref.store %37, %arg4[%c0_34, %c1] : memref<1x3xf32, #tpu.memory_space<smem>>
      %c0_35 = arith.constant 0 : index
      %c0_36 = arith.constant 0 : index
      %39 = vector.load %arg7[%c0_35, %c0_36] : memref<16x16xf32, #tpu.memory_space<vmem>>, vector<16x16xf32>
      %40 = vector.shape_cast %39 : vector<16x16xf32> to vector<1x16x16xf32>
      %cst_37 = arith.constant dense<0.000000e+00> : vector<1xf32>
      %41 = vector.multi_reduction <add>, %40, %cst_37 [1, 2] : vector<1x16x16xf32> to vector<1xf32>
      %42 = vector.shape_cast %41 : vector<1xf32> to vector<1x1x1xf32>
      %43 = vector.extract %42[0, 0, 0] : f32 from vector<1x1x1xf32>
      %c0_38 = arith.constant 0 : index
      %c2 = arith.constant 2 : index
      %44 = memref.load %arg4[%c0_38, %c2] : memref<1x3xf32, #tpu.memory_space<smem>>
      memref.store %43, %arg4[%c0_38, %c2] : memref<1x3xf32, #tpu.memory_space<smem>>
    } else {
    }
    return
  }
  func.func @transform_0(%arg0: i32, %arg1: i32) -> (i32, i32, i32, i32) {
    %c0_i32 = arith.constant 0 : i32
    %c0_i32_0 = arith.constant 0 : i32
    %c0_i32_1 = arith.constant 0 : i32
    return %arg0, %c0_i32, %arg1, %c0_i32_0 : i32, i32, i32, i32
  }
  func.func @transform_1(%arg0: i32, %arg1: i32) -> (i32, i32, i32, i32) {
    %c0_i32 = arith.constant 0 : i32
    %c0_i32_0 = arith.constant 0 : i32
    %c0_i32_1 = arith.constant 0 : i32
    return %arg0, %c0_i32, %arg1, %c0_i32_0 : i32, i32, i32, i32
  }
  func.func @transform_2(%arg0: i32, %arg1: i32) -> (i32, i32) {
    %c0_i32 = arith.constant 0 : i32
    %c0_i32_0 = arith.constant 0 : i32
    %c0_i32_1 = arith.constant 0 : i32
    return %c0_i32, %c0_i32_0 : i32, i32
  }
}

</mosaic_0001>

<llo_original>
// kernel: _dice_loss.1
$region0: #{_dice_loss.1}
  #allocation0 [shape = 'u32[]', space=smem, size = 0x4, offset = 0x4, fixed_abs, tag = 'smem constant byte address 0x4 - core index']
  #allocation1 [shape = 'u32[144,128]{1,0:T(1,128)}', space=vmem, size = 0x12000, scoped, tag = 'internal scratch']
  #allocation2 [shape = 'f32[16,16]{1,0:T(8,128)}', space=vmem, size = 0x2000, scoped, tag = 'scratch operand']
  #allocation3 [shape = 'f32[16,16]{1,0:T(8,128)}', space=vmem, size = 0x2000, scoped, tag = 'scratch operand']
  #allocation4 [shape = 'f32[16,16]{1,0:T(8,128)}', space=vmem, size = 0x2000, scoped, tag = 'scratch operand']
  #allocation11 [shape = 's32[]', space=sflag, size = 0x4, offset = 0, fixed_abs, tag = 'sflag constant byte address 0x0 - dummy sync flag']
  #allocation13 [shape = 's32[]', space=sflag, size = 0x4, offset = 0, fixed_abs, tag = 'sflag constant byte address 0x0 - dummy sync flag']
  %s0 = inlined_call_operand.hbm [shape: f32[2,4,16,16], index: 0, kind: input, shape index: {}]
  %s1 = inlined_call_operand.hbm [shape: f32[2,4,16,16], index: 1, kind: input, shape index: {}]
  %s2 = inlined_call_operand.vmem [shape: f32[1,3], index: 2, kind: output, shape index: {}]
  %s3 = sld [smem:[#allocation0]]
  $region34: #{_dice_loss.1} parent=0
    _
  %s5 = ssub.s32 1, %s3
  %s6 = scalar_select 0, %s5, %s3
  $region1: #{_dice_loss.1} parent=0
    #allocation5 [shape = 'u8[16384]{0}', space=vmem, size = 0x4000, scoped, tag = 'input window, operand 0, single buffered']
    #allocation6 [shape = 's32[1]{0}', space=sflag, size = 0x4, scoped, tag = 'scoped memory for _dice_loss.1']
    #allocation7 [shape = 's32[1]{0}', space=sflag, size = 0x4, scoped, tag = 'scoped memory for _dice_loss.1']
    #allocation8 [shape = 'u8[16384]{0}', space=vmem, size = 0x4000, scoped, tag = 'input window, operand 1, single buffered']
    #allocation9 [shape = 's32[1]{0}', space=sflag, size = 0x4, scoped, tag = 'scoped memory for _dice_loss.1']
    #allocation10 [shape = 'u8[512]{0}', space=smem, size = 0x200, scoped, tag = 'output window, operand 0, single buffered']
    %7 = vsyncpa [#allocation6], 0
    %8 = vsyncpa [#allocation9], 0
    %9 = vsyncpa [#allocation7], 0
    // Predicated region
    $region2: #{_dice_loss.1} parent=1 // pred_check
      _
    $region3: #{_dice_loss.1} parent=1 // pred_check_branch
      %11 = sbr.rel (0) target = $region5
    $region4: #{_dice_loss.1} parent=1 // pred_region
      #allocation12 [shape = 'u32[6]{0}', space=smem, size = 0x18, scoped, tag = 'DMA stride descriptor']
      %s13 = ssub.s32 512, 512
      %14 = vsyncadd [#allocation6], %s13
      %s16 = sshll.u32 1, 14
      %s17 = sxor.u32 4294967295, %s16
      %s19 = sld [smem:[#allocation0]]
      %s20 = sadd.s32 2, %s19
      %s22 = sshll.u32 7, 26
      %s23 = sxor.u32 4294967295, %s22
      %s24 = sand.u32 0, %s23
      %s25 = sshll.u32 %s20, 26
      %s26 = sor.u32 %s24, %s25
      %s27 = sshll.u32 [#allocation5], 4
      %s28 = int_to_ptr.vmem [resolvable:$true] %s27
      %34 = sst [smem:[#allocation12]] 1024
      %s35 = scalar_lea.smem [#allocation12], 1
      %36 = sst [smem:[%s35]] 256
      %s37 = scalar_lea.smem [#allocation12], 2
      %38 = sst [smem:[%s37]] 2
      %s39 = scalar_lea.smem [#allocation12], 3
      %40 = sst [smem:[%s39]] 128
      %s41 = scalar_lea.smem [#allocation12], 4
      %42 = sst [smem:[%s41]] 128
      %s43 = scalar_lea.smem [#allocation12], 5
      %44 = sst [smem:[%s43]] 8
      %46 = dma.general %s0, 512, %s28, [#allocation6], [#allocation11], [#allocation12], %s26, 0
    $region5: #{_dice_loss.1} parent=1 // pred_fallthru
      _
    // Predicated region
    $region6: #{_dice_loss.1} parent=1 // pred_check
      _
    $region7: #{_dice_loss.1} parent=1 // pred_check_branch
      %48 = sbr.rel (0) target = $region9
    $region8: #{_dice_loss.1} parent=1 // pred_region
      #allocation14 [shape = 'u32[6]{0}', space=smem, size = 0x18, scoped, tag = 'DMA stride descriptor']
      %s50 = ssub.s32 512, 512
      %51 = vsyncadd [#allocation9], %s50
      %s53 = sshll.u32 1, 14
      %s54 = sxor.u32 4294967295, %s53
      %s56 = sld [smem:[#allocation0]]
      %s57 = sadd.s32 2, %s56
      %s59 = sshll.u32 7, 26
      %s60 = sxor.u32 4294967295, %s59
      %s61 = sand.u32 0, %s60
      %s62 = sshll.u32 %s57, 26
      %s63 = sor.u32 %s61, %s62
      %s64 = sshll.u32 [#allocation8], 4
      %s65 = int_to_ptr.vmem [resolvable:$true] %s64
      %71 = sst [smem:[#allocation14]] 1024
      %s72 = scalar_lea.smem [#allocation14], 1
      %73 = sst [smem:[%s72]] 256
      %s74 = scalar_lea.smem [#allocation14], 2
      %75 = sst [smem:[%s74]] 2
      %s76 = scalar_lea.smem [#allocation14], 3
      %77 = sst [smem:[%s76]] 128
      %s78 = scalar_lea.smem [#allocation14], 4
      %79 = sst [smem:[%s78]] 128
      %s80 = scalar_lea.smem [#allocation14], 5
      %81 = sst [smem:[%s80]] 8
      %83 = dma.general %s1, 512, %s65, [#allocation9], [#allocation13], [#allocation14], %s63, 0
    $region9: #{_dice_loss.1} parent=1 // pred_fallthru
      _
    // Predicated region
    $region10: #{_dice_loss.1} parent=1 // pred_check
      _
    $region11: #{_dice_loss.1} parent=1 // pred_check_branch
      %85 = sbr.rel (0) target = $region13
    $region12: #{_dice_loss.1} parent=1 // pred_region
      %86 = dma.done [#allocation6], 512
    $region13: #{_dice_loss.1} parent=1 // pred_fallthru
      _
    // Predicated region
    $region14: #{_dice_loss.1} parent=1 // pred_check
      _
    $region15: #{_dice_loss.1} parent=1 // pred_check_branch
      %88 = sbr.rel (0) target = $region17
    $region16: #{_dice_loss.1} parent=1 // pred_region
      %89 = dma.done [#allocation9], 512
    $region17: #{_dice_loss.1} parent=1 // pred_fallthru
      _
    %p90 = scmp.eq.s32.totalorder 0, 0
    %p91 = scmp.eq.s32.totalorder 0, 0
    %p92 = pnand %p90, %p91
    %p93 = pneg %p92
    // Predicated region
    $region18: #{_dice_loss.1} parent=1 // pred_check
      _
    $region19: #{_dice_loss.1} parent=1 // pred_check_branch
      %95 = sbr.rel (%p92) target = $region21
    $region20: #{_dice_loss.1} parent=1 // pred_region
      %vm96 = vcmask 130048
      %97 = vst.msk [vmem:[#allocation2] sm:$0xff] %vm96, 0.0
      %98 = vst.msk [vmem:[#allocation2 + $0x8] sm:$0xff] %vm96, 0.0
      %99 = vst.msk [vmem:[#allocation3] sm:$0xff] %vm96, 0.0
      %100 = vst.msk [vmem:[#allocation3 + $0x8] sm:$0xff] %vm96, 0.0
      %101 = vst.msk [vmem:[#allocation4] sm:$0xff] %vm96, 0.0
      %102 = vst.msk [vmem:[#allocation4 + $0x8] sm:$0xff] %vm96, 0.0
    $region21: #{_dice_loss.1} parent=1 // pred_fallthru
      _
    %v103 = vld [vmem:[#allocation5] sm:$0xff]
    %v104 = vld [vmem:[#allocation5 + $0x8] sm:$0xff]
    %v105 = vld [vmem:[#allocation5 + $0x10] sm:$0xff]
    %v106 = vld [vmem:[#allocation5 + $0x18] sm:$0xff]
    %v107 = vld [vmem:[#allocation8] sm:$0xff]
    %v108 = vld [vmem:[#allocation8 + $0x8] sm:$0xff]
    %v109 = vld [vmem:[#allocation8 + $0x10] sm:$0xff]
    %v110 = vld [vmem:[#allocation8 + $0x18] sm:$0xff]
    %v111 = vld [vmem:[#allocation2] sm:$0xff]
    %v112 = vld [vmem:[#allocation2 + $0x8] sm:$0xff]
    %v113 = vmul.f32 %v103, %v107
    %v114 = vmul.f32 %v104, %v108
    %v115 = vmul.f32 %v105, %v109
    %v116 = vmul.f32 %v106, %v110
    %vm117 = vcmask 130048
    %v118 = vsel %vm117, %v113, 0.0
    %v119 = vsel %vm117, %v115, 0.0
    %v120 = vadd.f32 %v118, %v119
    %v121 = vsel %vm117, %v114, 0.0
    %v122 = vsel %vm117, %v116, 0.0
    %v123 = vadd.f32 %v121, %v122
    %v124 = vadd.f32 %v111, %v120
    %v125 = vadd.f32 %v112, %v123
    %126 = vst.msk [vmem:[#allocation2] sm:$0xff] %vm117, %v124
    %127 = vst.msk [vmem:[#allocation2 + $0x8] sm:$0xff] %vm117, %v125
    %v128 = vld [vmem:[#allocation3] sm:$0xff]
    %v129 = vld [vmem:[#allocation3 + $0x8] sm:$0xff]
    %v130 = vsel %vm117, %v103, 0.0
    %v131 = vsel %vm117, %v105, 0.0
    %v132 = vadd.f32 %v130, %v131
    %v133 = vsel %vm117, %v104, 0.0
    %v134 = vsel %vm117, %v106, 0.0
    %v135 = vadd.f32 %v133, %v134
    %v136 = vadd.f32 %v128, %v132
    %v137 = vadd.f32 %v129, %v135
    %138 = vst.msk [vmem:[#allocation3] sm:$0xff] %vm117, %v136
    %139 = vst.msk [vmem:[#allocation3 + $0x8] sm:$0xff] %vm117, %v137
    %v140 = vld [vmem:[#allocation4] sm:$0xff]
    %v141 = vld [vmem:[#allocation4 + $0x8] sm:$0xff]
    %v142 = vsel %vm117, %v107, 0.0
    %v143 = vsel %vm117, %v109, 0.0
    %v144 = vadd.f32 %v142, %v143
    %v145 = vsel %vm117, %v108, 0.0
    %v146 = vsel %vm117, %v110, 0.0
    %v147 = vadd.f32 %v145, %v146
    %v148 = vadd.f32 %v140, %v144
    %v149 = vadd.f32 %v141, %v147
    %150 = vst.msk [vmem:[#allocation4] sm:$0xff] %vm117, %v148
    %151 = vst.msk [vmem:[#allocation4 + $0x8] sm:$0xff] %vm117, %v149
    // Predicated region
    $region22: #{_dice_loss.1} parent=1 // pred_check
      _
    $region23: #{_dice_loss.1} parent=1 // pred_check_branch
      %153 = sbr.rel (%p92) target = $region25
    $region24: #{_dice_loss.1} parent=1 // pred_region
      %v154 = vld [vmem:[#allocation2] sm:$0xff]
      %v155 = vld [vmem:[#allocation2 + $0x8] sm:$0xff]
      %v156 = vsel %vm117, %v154, 0.0
      %v157 = vsel %vm117, %v155, 0.0
      %v158 = vadd.f32 %v156, %v157
      %159 = vadd.xlane.f32.xlu0 %v158
      %v160 = vpop.xlane.xlu0 %159
      %v161 = vrot.slane %v160, 4
      %v162 = vadd.f32 %v160, %v161
      %v163 = vrot.slane %v162, 2
      %v164 = vadd.f32 %v162, %v163
      %v165 = vrot.slane %v164, 1
      %v166 = vadd.f32 %v164, %v165
      %s167 = vtos %v166
      %s168 = scalar_lea.smem [#allocation10], 0
      %169 = sst [smem:[%s168]] %s167
      %v170 = vld [vmem:[#allocation3] sm:$0xff]
      %v171 = vld [vmem:[#allocation3 + $0x8] sm:$0xff]
      %v172 = vsel %vm117, %v170, 0.0
      %v173 = vsel %vm117, %v171, 0.0
      %v174 = vadd.f32 %v172, %v173
      %175 = vadd.xlane.f32.xlu0 %v174
      %v176 = vpop.xlane.xlu0 %175
      %v177 = vrot.slane %v176, 4
      %v178 = vadd.f32 %v176, %v177
      %v179 = vrot.slane %v178, 2
      %v180 = vadd.f32 %v178, %v179
      %v181 = vrot.slane %v180, 1
      %v182 = vadd.f32 %v180, %v181
      %s183 = vtos %v182
      %s184 = scalar_lea.smem [#allocation10], 1
      %185 = sst [smem:[%s184]] %s183
      %v186 = vld [vmem:[#allocation4] sm:$0xff]
      %v187 = vld [vmem:[#allocation4 + $0x8] sm:$0xff]
      %v188 = vsel %vm117, %v186, 0.0
      %v189 = vsel %vm117, %v187, 0.0
      %v190 = vadd.f32 %v188, %v189
      %191 = vadd.xlane.f32.xlu0 %v190
      %v192 = vpop.xlane.xlu0 %191
      %v193 = vrot.slane %v192, 4
      %v194 = vadd.f32 %v192, %v193
      %v195 = vrot.slane %v194, 2
      %v196 = vadd.f32 %v194, %v195
      %v197 = vrot.slane %v196, 1
      %v198 = vadd.f32 %v196, %v197
      %s199 = vtos %v198
      %s200 = scalar_lea.smem [#allocation10], 2
      %201 = sst [smem:[%s200]] %s199
    $region25: #{_dice_loss.1} parent=1 // pred_fallthru
      _
    // Predicated region
    $region26: #{_dice_loss.1} parent=1 // pred_check
      _
    $region27: #{_dice_loss.1} parent=1 // pred_check_branch
      %203 = sbr.rel (0) target = $region29
    $region28: #{_dice_loss.1} parent=1 // pred_region
      %s205 = ssub.s32 16, 16
      %206 = vsyncadd [#allocation7], %s205
      %s208 = sshll.u32 %s2, 4
      %s209 = int_to_ptr.vmem [resolvable:$true] %s208
      %211 = dma.smem_to_vmem [#allocation10], 16, %s209, [#allocation7]
    $region29: #{_dice_loss.1} parent=1 // pred_fallthru
      _
    // Predicated region
    $region30: #{_dice_loss.1} parent=1 // pred_check
      _
    $region31: #{_dice_loss.1} parent=1 // pred_check_branch
      %213 = sbr.rel (0) target = $region33
    $region32: #{_dice_loss.1} parent=1 // pred_region
      %214 = dma.done [#allocation7], 16
    $region33: #{_dice_loss.1} parent=1 // pred_fallthru
      _
    %215 = sfence
    %216 = vsyncpa [#allocation6], 1
    %217 = vsyncpa [#allocation9], 1
    %218 = vsyncpa [#allocation7], 1

</llo_original>
